<compile_context>
chip_gen: v6e
topology: v6e:2x2x1
jax: 0.10.0
libtpu: 0.0.40
codegen_flags: <defaults>
</compile_context>

<pallas_src>
import jax
import jax.numpy as jnp
import numpy as np
from jax.experimental import pallas as pl
from jax.experimental.pallas import tpu as pltpu

# ----------------------------------------------------------------------------
# Model dimensions (PyTorch module built from shape=(B, dimension, patch, patch))
# ----------------------------------------------------------------------------
DIM = 256                      # `dimension` -- must be divisible by 32
N_ROWS = 16                    # number of patch feature vectors (rows)
LATENT = DIM // 32             # 8
HEAD_PAD = 128                 # fused [mu | logvar] head padded to 128 lanes

# encoder: D -> D/2 -> D/4 -> D/8 -> D/16 -> D/16   (all ReLU)
# fc_mu / fc_logvar: D/16 -> D/32                   (no activation)
# decoder: D/32 -> D/16 -> D/8 -> D/4 -> D/2 -> D -> D (ReLU after all but last)
ENC_DIMS = [DIM, DIM // 2, DIM // 4, DIM // 8, DIM // 16, DIM // 16]
DEC_DIMS = [LATENT, DIM // 16, DIM // 8, DIM // 4, DIM // 2, DIM, DIM]

# 13 PyTorch-equivalent layers (in, out, relu?):
#   0..4 encoder, 5 fc_mu, 6 fc_logvar, 7..12 decoder
LAYER_DEFS = (
    [(ENC_DIMS[i], ENC_DIMS[i + 1], True) for i in range(5)]
    + [(ENC_DIMS[5], LATENT, False), (ENC_DIMS[5], LATENT, False)]
    + [(DEC_DIMS[i], DEC_DIMS[i + 1], i < 5) for i in range(6)]
)

# After fusing the two heads into one matmul: 12 layers in execution order.
N_ENC = 5
N_DEC = 6
# True (unpadded) per-layer dims of the fused network, for flop accounting.
FUSED_TRUE_DEFS = (
    [(ENC_DIMS[i], ENC_DIMS[i + 1]) for i in range(N_ENC)]
    + [(ENC_DIMS[5], 2 * LATENT)]
    + [(DEC_DIMS[i], DEC_DIMS[i + 1]) for i in range(N_DEC)]
)
N_FUSED = len(FUSED_TRUE_DEFS)  # 12

# Packed-weight layout: for each fused layer, (row_offset, din, dout_read, relu).
# Row offsets stay multiples of 16 (bf16 sublane tile) so all static slices of the
# packed weight buffer are tile-aligned. The head reads 128 (zero-padded) lanes.
W_LANES = 256


def _build_layout():
    defs = (
        [(ENC_DIMS[i], ENC_DIMS[i + 1], True) for i in range(N_ENC)]
        + [(ENC_DIMS[5], HEAD_PAD, False)]                       # [mu|logvar|0...]
        + [(DEC_DIMS[i], DEC_DIMS[i + 1], i < N_DEC - 1) for i in range(N_DEC)]
    )
    layout, off = [], 0
    for din, dout, relu in defs:
        layout.append((off, din, dout, relu))
        off += -(-din // 16) * 16      # 16-aligned row stride
    return tuple(layout), off


LAYOUT, W_ROWS = _build_layout()        # W_ROWS = 1024


# ----------------------------------------------------------------------------
# Kernel: full VAE forward for a tile of rows. All weights fit in VMEM.
# ----------------------------------------------------------------------------
def vae_kernel(x_ref, eps_ref, w_ref, b_ref, xrec_ref, mulogvar_ref):
    def linear(h, k):
        off, din, dout, relu = LAYOUT[k]
        w = w_ref[off:off + din, 0:dout]          # bf16 (din, dout), static slice
        b = b_ref[k:k + 1, 0:dout]                # f32  (1, dout)
        y = jnp.dot(h.astype(jnp.bfloat16), w,
                    preferred_element_type=jnp.float32) + b
        return jnp.maximum(y, 0.0) if relu else y

    # encoder (5 ReLU linears); x already bf16
    h = x_ref[...]
    for k in range(N_ENC):
        h = linear(h, k)

    # fused heads: one matmul producing lane-dense [mu | logvar | zeros] slab
    ml = linear(h, N_ENC)                         # (tm, 128) f32
    mulogvar_ref[...] = ml

    # slice BEFORE exp so padded lanes never feed compute
    mu = ml[:, :LATENT]
    logvar = ml[:, LATENT:2 * LATENT]

    # reparameterize: z = mu + eps * exp(0.5 * logvar)  (f32 on VPU/EUP)
    std = jnp.exp(0.5 * logvar)
    z = mu + eps_ref[...].astype(jnp.float32) * std

    # decoder (5 ReLU linears + 1 plain linear)
    h = z
    for i in range(N_DEC):
        h = linear(h, N_ENC + 1 + i)
    xrec_ref[...] = h.astype(xrec_ref.dtype)


# ----------------------------------------------------------------------------
# Wrapper
# ----------------------------------------------------------------------------
def _choose_tile(n):
    # Small batches: one grid step (weights DMA'd once, no pipeline overhead).
    if n <= 16:
        return n
    # Moderate/large batches: at least 2 grid steps so rows shard across both
    # v7x TensorCores; cap the tile so per-step VMEM stays modest on v5e.
    if n <= 1024:
        return -(-((n + 1) // 2) // 8) * 8
    return 512


@jax.jit
def vae_forward(x, eps, weights, biases):
    n, d = x.shape
    assert d == DIM

    tm = _choose_tile(n)
    n_pad = pl.cdiv(n, tm) * tm
    grid = (n_pad // tm,)

    # bf16 activation stream (first MXU operand is bf16 anyway); zero-pad ragged rows.
    x_in = x.astype(jnp.bfloat16)
    eps_in = eps.astype(jnp.float32)
    if n_pad != n:
        x_in = jnp.pad(x_in, ((0, n_pad - n), (0, 0)))
        eps_in = jnp.pad(eps_in, ((0, n_pad - n), (0, 0)))

    # Fuse fc_mu / fc_logvar into one head (zero-padded to 128 output lanes) and
    # pack all 12 weights / 12 biases into two buffers with static offsets.
    w_head = jnp.concatenate([weights[5], weights[6]], axis=1)      # (16, 16)
    b_head = jnp.concatenate([biases[5], biases[6]], axis=1)        # (1, 16)
    fused_w = list(weights[:5]) + [w_head] + list(weights[7:])
    fused_b = list(biases[:5]) + [b_head] + list(biases[7:])

    w_packed = jnp.zeros((W_ROWS, W_LANES), jnp.bfloat16)
    b_packed = jnp.zeros((N_FUSED, W_LANES), jnp.float32)
    for k, (off, din, _, _) in enumerate(LAYOUT):
        w = fused_w[k]
        b = fused_b[k]
        w_packed = w_packed.at[off:off + din, :w.shape[1]].set(w.astype(jnp.bfloat16))
        b_packed = b_packed.at[k, :b.shape[1]].set(b[0].astype(jnp.float32))

    x_spec = pl.BlockSpec((tm, d), lambda i: (i, 0))
    eps_spec = pl.BlockSpec((tm, LATENT), lambda i: (i, 0))
    # Grid-invariant parameter buffers (index_map constant across the grid).
    # (pl.Buffered(1) would drop the second pipeline buffer; skipped -- the test
    #  batch runs a single grid step so there is nothing to re-fetch anyway.)
    w_spec = pl.BlockSpec((W_ROWS, W_LANES), lambda i: (0, 0))
    b_spec = pl.BlockSpec((N_FUSED, W_LANES), lambda i: (0, 0))

    out_shape = (
        jax.ShapeDtypeStruct((n_pad, d), jnp.float32),          # x_recon
        jax.ShapeDtypeStruct((n_pad, HEAD_PAD), jnp.float32),   # [mu|logvar|0...]
    )
    out_specs = (
        pl.BlockSpec((tm, d), lambda i: (i, 0)),
        pl.BlockSpec((tm, HEAD_PAD), lambda i: (i, 0)),
    )

    flops = 2 * n_pad * sum(din * dout for din, dout in FUSED_TRUE_DEFS)
    bytes_accessed = (
        x_in.size * 2 + eps_in.size * 4
        + w_packed.size * 2 + b_packed.size * 4
        + n_pad * d * 4 + n_pad * HEAD_PAD * 4
    )
    cost = pl.CostEstimate(flops=flops, transcendentals=n_pad * LATENT,
                           bytes_accessed=bytes_accessed)

    x_recon, mulogvar = pl.pallas_call(
        vae_kernel,
        out_shape=out_shape,
        grid_spec=pltpu.PrefetchScalarGridSpec(
            num_scalar_prefetch=0,
            grid=grid,
            in_specs=[x_spec, eps_spec, w_spec, b_spec],
            out_specs=out_specs,
        ),
        compiler_params=pltpu.CompilerParams(
            dimension_semantics=("parallel",)),
        cost_estimate=cost,
    )(x_in, eps_in, w_packed, b_packed)

    x_recon = x_recon[:n]
    mu = mulogvar[:n, :LATENT]
    logvar = mulogvar[:n, LATENT:2 * LATENT]
    return x_recon, mu, logvar


# ----------------------------------------------------------------------------
# Deterministic parameter init (PyTorch-default-like uniform(+-1/sqrt(fan_in)))
# ----------------------------------------------------------------------------
def init_params(key):
    weights, biases = [], []
    for (din, dout, _) in LAYER_DEFS:
        key, kw, kb = jax.random.split(key, 3)
        bound = 1.0 / np.sqrt(din)
        # stored as (in, out): equals PyTorch weight (out, in) transposed.
        w = jax.random.uniform(kw, (din, dout), jnp.float32, -bound, bound)
        b = jax.random.uniform(kb, (1, dout), jnp.float32, -bound, bound)
        weights.append(w)
        biases.append(b)
    return weights, biases


def reference_forward(x, eps, weights, biases):
    # Same arithmetic as the kernel: bf16 MXU operands, f32 accumulation,
    # f32 elementwise.
    def lin(h, w, b, relu):
        y = jnp.dot(h.astype(jnp.bfloat16), w.astype(jnp.bfloat16),
                    preferred_element_type=jnp.float32) + b
        return jnp.maximum(y, 0.0) if relu else y

    h = x
    for k in range(5):
        h = lin(h, weights[k], biases[k], True)
    mu = lin(h, weights[5], biases[5], False)
    logvar = lin(h, weights[6], biases[6], False)
    z = mu + eps * jnp.exp(0.5 * logvar)
    h = z
    for k in range(7, 12):
        h = lin(h, weights[k], biases[k], True)
    x_recon = lin(h, weights[12], biases[12], False)
    return x_recon, mu, logvar


if __name__ == "__main__":
    key = jax.random.PRNGKey(0)
    k_param, k_x, k_eps = jax.random.split(key, 3)

    weights, biases = init_params(k_param)
    x = jax.random.normal(k_x, (N_ROWS, DIM), jnp.float32)
    # TODO(synk): eps (torch.randn_like) is sampled in plain JAX and passed in,
    # rather than drawn with the in-kernel PRNG (pltpu.stateful_normal).
    eps = jax.random.normal(k_eps, (N_ROWS, LATENT), jnp.float32)

    x_recon, mu, logvar = vae_forward(x, eps, weights, biases)
    jax.block_until_ready((x_recon, mu, logvar))

    # sanity check against a plain-JAX reference with identical arithmetic
    xr_ref, mu_ref, lv_ref = reference_forward(x, eps, weights, biases)
    np.testing.assert_allclose(np.asarray(x_recon), np.asarray(xr_ref),
                               rtol=2e-3, atol=2e-3)
    np.testing.assert_allclose(np.asarray(mu), np.asarray(mu_ref),
                               rtol=2e-3, atol=2e-3)
    np.testing.assert_allclose(np.asarray(logvar), np.asarray(lv_ref),
                               rtol=2e-3, atol=2e-3)

    assert x_recon.shape == (N_ROWS, DIM)
    assert mu.shape == (N_ROWS, LATENT) and logvar.shape == (N_ROWS, LATENT)
    print("KERNEL_OK")
</pallas_src>

<mosaic_0001>
module attributes {stable_mosaic.version = 11 : i64} {
  func.func @vae_kernel(%arg0: i32, %arg1: memref<16x256xbf16, #tpu.memory_space<vmem>>, %arg2: memref<16x8xf32, #tpu.memory_space<vmem>>, %arg3: memref<1024x256xbf16, #tpu.memory_space<vmem>>, %arg4: memref<12x256xf32, #tpu.memory_space<vmem>>, %arg5: memref<16x256xf32, #tpu.memory_space<vmem>>, %arg6: memref<16x128xf32, #tpu.memory_space<vmem>>) attributes {dimension_semantics = [#tpu.dimension_semantics<parallel>], iteration_bounds = array<i64: 1>, scalar_prefetch = 0 : i64, scratch_operands = 0 : i64, tpu.core_type = #tpu.core_type<tc>, window_params = [{transform_indices = @transform_0, window_bounds = array<i64: 16, 256>}, {transform_indices = @transform_1, window_bounds = array<i64: 16, 8>}, {pipeline_mode = #tpu.pipeline_mode<synchronous>, transform_indices = @transform_2, window_bounds = array<i64: 1024, 256>}, {pipeline_mode = #tpu.pipeline_mode<synchronous>, transform_indices = @transform_3, window_bounds = array<i64: 12, 256>}, {transform_indices = @transform_4, window_bounds = array<i64: 16, 256>}, {transform_indices = @transform_5, window_bounds = array<i64: 16, 128>}]} {
    %c0 = arith.constant 0 : index
    %c0_0 = arith.constant 0 : index
    %0 = vector.load %arg1[%c0, %c0_0] : memref<16x256xbf16, #tpu.memory_space<vmem>>, vector<16x256xbf16>
    %c0_1 = arith.constant 0 : index
    %c0_2 = arith.constant 0 : index
    %1 = vector.load %arg3[%c0_1, %c0_2] : memref<1024x256xbf16, #tpu.memory_space<vmem>>, vector<256x128xbf16>
    %c0_3 = arith.constant 0 : index
    %c0_4 = arith.constant 0 : index
    %2 = vector.load %arg4[%c0_3, %c0_4] : memref<12x256xf32, #tpu.memory_space<vmem>>, vector<1x128xf32>
    %cst = arith.constant dense<0.000000e+00> : vector<16x128xf32>
    %3 = tpu.matmul %0, %1, %cst {dimension_numbers = #tpu.dot_dimension_numbers<[1], [0], [0], [1], [0, 0, 1, 1], [], []>} : vector<16x256xbf16>, vector<256x128xbf16>, vector<16x128xf32> -> vector<16x128xf32>
    %4 = vector.broadcast %2 : vector<1x128xf32> to vector<16x128xf32>
    %5 = arith.addf %3, %4 : vector<16x128xf32>
    %cst_5 = arith.constant 0.000000e+00 : f32
    %6 = vector.broadcast %cst_5 : f32 to vector<16x128xf32>
    %7 = arith.maximumf %5, %6 : vector<16x128xf32>
    %c256 = arith.constant 256 : index
    %c0_6 = arith.constant 0 : index
    %8 = vector.load %arg3[%c256, %c0_6] : memref<1024x256xbf16, #tpu.memory_space<vmem>>, vector<128x64xbf16>
    %c1 = arith.constant 1 : index
    %c0_7 = arith.constant 0 : index
    %9 = vector.load %arg4[%c1, %c0_7] : memref<12x256xf32, #tpu.memory_space<vmem>>, vector<1x64xf32>
    %10 = arith.truncf %7 : vector<16x128xf32> to vector<16x128xbf16>
    %cst_8 = arith.constant dense<0.000000e+00> : vector<16x64xf32>
    %11 = tpu.matmul %10, %8, %cst_8 {dimension_numbers = #tpu.dot_dimension_numbers<[1], [0], [0], [1], [0, 0, 1, 1], [], []>} : vector<16x128xbf16>, vector<128x64xbf16>, vector<16x64xf32> -> vector<16x64xf32>
    %12 = vector.broadcast %9 : vector<1x64xf32> to vector<16x64xf32>
    %13 = arith.addf %11, %12 : vector<16x64xf32>
    %cst_9 = arith.constant 0.000000e+00 : f32
    %14 = vector.broadcast %cst_9 : f32 to vector<16x64xf32>
    %15 = arith.maximumf %13, %14 : vector<16x64xf32>
    %c384 = arith.constant 384 : index
    %c0_10 = arith.constant 0 : index
    %16 = vector.load %arg3[%c384, %c0_10] : memref<1024x256xbf16, #tpu.memory_space<vmem>>, vector<64x32xbf16>
    %c2 = arith.constant 2 : index
    %c0_11 = arith.constant 0 : index
    %17 = vector.load %arg4[%c2, %c0_11] : memref<12x256xf32, #tpu.memory_space<vmem>>, vector<1x32xf32>
    %18 = arith.truncf %15 : vector<16x64xf32> to vector<16x64xbf16>
    %cst_12 = arith.constant dense<0.000000e+00> : vector<16x32xf32>
    %19 = tpu.matmul %18, %16, %cst_12 {dimension_numbers = #tpu.dot_dimension_numbers<[1], [0], [0], [1], [0, 0, 1, 1], [], []>} : vector<16x64xbf16>, vector<64x32xbf16>, vector<16x32xf32> -> vector<16x32xf32>
    %20 = vector.broadcast %17 : vector<1x32xf32> to vector<16x32xf32>
    %21 = arith.addf %19, %20 : vector<16x32xf32>
    %cst_13 = arith.constant 0.000000e+00 : f32
    %22 = vector.broadcast %cst_13 : f32 to vector<16x32xf32>
    %23 = arith.maximumf %21, %22 : vector<16x32xf32>
    %c448 = arith.constant 448 : index
    %c0_14 = arith.constant 0 : index
    %24 = vector.load %arg3[%c448, %c0_14] : memref<1024x256xbf16, #tpu.memory_space<vmem>>, vector<32x16xbf16>
    %c3 = arith.constant 3 : index
    %c0_15 = arith.constant 0 : index
    %25 = vector.load %arg4[%c3, %c0_15] : memref<12x256xf32, #tpu.memory_space<vmem>>, vector<1x16xf32>
    %26 = arith.truncf %23 : vector<16x32xf32> to vector<16x32xbf16>
    %cst_16 = arith.constant dense<0.000000e+00> : vector<16x16xf32>
    %27 = tpu.matmul %26, %24, %cst_16 {dimension_numbers = #tpu.dot_dimension_numbers<[1], [0], [0], [1], [0, 0, 1, 1], [], []>} : vector<16x32xbf16>, vector<32x16xbf16>, vector<16x16xf32> -> vector<16x16xf32>
    %28 = vector.broadcast %25 : vector<1x16xf32> to vector<16x16xf32>
    %29 = arith.addf %27, %28 : vector<16x16xf32>
    %cst_17 = arith.constant 0.000000e+00 : f32
    %30 = vector.broadcast %cst_17 : f32 to vector<16x16xf32>
    %31 = arith.maximumf %29, %30 : vector<16x16xf32>
    %c480 = arith.constant 480 : index
    %c0_18 = arith.constant 0 : index
    %32 = vector.load %arg3[%c480, %c0_18] : memref<1024x256xbf16, #tpu.memory_space<vmem>>, vector<16x16xbf16>
    %c4 = arith.constant 4 : index
    %c0_19 = arith.constant 0 : index
    %33 = vector.load %arg4[%c4, %c0_19] : memref<12x256xf32, #tpu.memory_space<vmem>>, vector<1x16xf32>
    %34 = arith.truncf %31 : vector<16x16xf32> to vector<16x16xbf16>
    %cst_20 = arith.constant dense<0.000000e+00> : vector<16x16xf32>
    %35 = tpu.matmul %34, %32, %cst_20 {dimension_numbers = #tpu.dot_dimension_numbers<[1], [0], [0], [1], [0, 0, 1, 1], [], []>} : vector<16x16xbf16>, vector<16x16xbf16>, vector<16x16xf32> -> vector<16x16xf32>
    %36 = vector.broadcast %33 : vector<1x16xf32> to vector<16x16xf32>
    %37 = arith.addf %35, %36 : vector<16x16xf32>
    %cst_21 = arith.constant 0.000000e+00 : f32
    %38 = vector.broadcast %cst_21 : f32 to vector<16x16xf32>
    %39 = arith.maximumf %37, %38 : vector<16x16xf32>
    %c496 = arith.constant 496 : index
    %c0_22 = arith.constant 0 : index
    %40 = vector.load %arg3[%c496, %c0_22] : memref<1024x256xbf16, #tpu.memory_space<vmem>>, vector<16x128xbf16>
    %c5 = arith.constant 5 : index
    %c0_23 = arith.constant 0 : index
    %41 = vector.load %arg4[%c5, %c0_23] : memref<12x256xf32, #tpu.memory_space<vmem>>, vector<1x128xf32>
    %42 = arith.truncf %39 : vector<16x16xf32> to vector<16x16xbf16>
    %cst_24 = arith.constant dense<0.000000e+00> : vector<16x128xf32>
    %43 = tpu.matmul %42, %40, %cst_24 {dimension_numbers = #tpu.dot_dimension_numbers<[1], [0], [0], [1], [0, 0, 1, 1], [], []>} : vector<16x16xbf16>, vector<16x128xbf16>, vector<16x128xf32> -> vector<16x128xf32>
    %44 = vector.broadcast %41 : vector<1x128xf32> to vector<16x128xf32>
    %45 = arith.addf %43, %44 : vector<16x128xf32>
    %c0_25 = arith.constant 0 : index
    %c0_26 = arith.constant 0 : index
    %46 = vector.load %arg6[%c0_25, %c0_26] : memref<16x128xf32, #tpu.memory_space<vmem>>, vector<16x128xf32>
    tpu.vector_store %arg6[%c0_25, %c0_26], %45 {strides = array<i32>} : memref<16x128xf32, #tpu.memory_space<vmem>>, vector<16x128xf32>,
    %47 = vector.extract_strided_slice %45 {offsets = [0, 0], sizes = [16, 8], strides = [1, 1]} : vector<16x128xf32> to vector<16x8xf32>
    %48 = vector.extract_strided_slice %45 {offsets = [0, 8], sizes = [16, 8], strides = [1, 1]} : vector<16x128xf32> to vector<16x8xf32>
    %cst_27 = arith.constant 5.000000e-01 : f32
    %49 = vector.broadcast %cst_27 : f32 to vector<16x8xf32>
    %50 = arith.mulf %49, %48 : vector<16x8xf32>
    %51 = math.exp %50 : vector<16x8xf32>
    %c0_28 = arith.constant 0 : index
    %c0_29 = arith.constant 0 : index
    %52 = vector.load %arg2[%c0_28, %c0_29] : memref<16x8xf32, #tpu.memory_space<vmem>>, vector<16x8xf32>
    %53 = arith.mulf %52, %51 : vector<16x8xf32>
    %54 = arith.addf %47, %53 : vector<16x8xf32>
    %c512 = arith.constant 512 : index
    %c0_30 = arith.constant 0 : index
    %55 = vector.load %arg3[%c512, %c0_30] : memref<1024x256xbf16, #tpu.memory_space<vmem>>, vector<8x16xbf16>
    %c6 = arith.constant 6 : index
    %c0_31 = arith.constant 0 : index
    %56 = vector.load %arg4[%c6, %c0_31] : memref<12x256xf32, #tpu.memory_space<vmem>>, vector<1x16xf32>
    %57 = arith.truncf %54 : vector<16x8xf32> to vector<16x8xbf16>
    %cst_32 = arith.constant dense<0.000000e+00> : vector<16x16xf32>
    %58 = tpu.matmul %57, %55, %cst_32 {dimension_numbers = #tpu.dot_dimension_numbers<[1], [0], [0], [1], [0, 0, 1, 1], [], []>} : vector<16x8xbf16>, vector<8x16xbf16>, vector<16x16xf32> -> vector<16x16xf32>
    %59 = vector.broadcast %56 : vector<1x16xf32> to vector<16x16xf32>
    %60 = arith.addf %58, %59 : vector<16x16xf32>
    %cst_33 = arith.constant 0.000000e+00 : f32
    %61 = vector.broadcast %cst_33 : f32 to vector<16x16xf32>
    %62 = arith.maximumf %60, %61 : vector<16x16xf32>
    %c528 = arith.constant 528 : index
    %c0_34 = arith.constant 0 : index
    %63 = vector.load %arg3[%c528, %c0_34] : memref<1024x256xbf16, #tpu.memory_space<vmem>>, vector<16x32xbf16>
    %c7 = arith.constant 7 : index
    %c0_35 = arith.constant 0 : index
    %64 = vector.load %arg4[%c7, %c0_35] : memref<12x256xf32, #tpu.memory_space<vmem>>, vector<1x32xf32>
    %65 = arith.truncf %62 : vector<16x16xf32> to vector<16x16xbf16>
    %cst_36 = arith.constant dense<0.000000e+00> : vector<16x32xf32>
    %66 = tpu.matmul %65, %63, %cst_36 {dimension_numbers = #tpu.dot_dimension_numbers<[1], [0], [0], [1], [0, 0, 1, 1], [], []>} : vector<16x16xbf16>, vector<16x32xbf16>, vector<16x32xf32> -> vector<16x32xf32>
    %67 = vector.broadcast %64 : vector<1x32xf32> to vector<16x32xf32>
    %68 = arith.addf %66, %67 : vector<16x32xf32>
    %cst_37 = arith.constant 0.000000e+00 : f32
    %69 = vector.broadcast %cst_37 : f32 to vector<16x32xf32>
    %70 = arith.maximumf %68, %69 : vector<16x32xf32>
    %c544 = arith.constant 544 : index
    %c0_38 = arith.constant 0 : index
    %71 = vector.load %arg3[%c544, %c0_38] : memref<1024x256xbf16, #tpu.memory_space<vmem>>, vector<32x64xbf16>
    %c8 = arith.constant 8 : index
    %c0_39 = arith.constant 0 : index
    %72 = vector.load %arg4[%c8, %c0_39] : memref<12x256xf32, #tpu.memory_space<vmem>>, vector<1x64xf32>
    %73 = arith.truncf %70 : vector<16x32xf32> to vector<16x32xbf16>
    %cst_40 = arith.constant dense<0.000000e+00> : vector<16x64xf32>
    %74 = tpu.matmul %73, %71, %cst_40 {dimension_numbers = #tpu.dot_dimension_numbers<[1], [0], [0], [1], [0, 0, 1, 1], [], []>} : vector<16x32xbf16>, vector<32x64xbf16>, vector<16x64xf32> -> vector<16x64xf32>
    %75 = vector.broadcast %72 : vector<1x64xf32> to vector<16x64xf32>
    %76 = arith.addf %74, %75 : vector<16x64xf32>
    %cst_41 = arith.constant 0.000000e+00 : f32
    %77 = vector.broadcast %cst_41 : f32 to vector<16x64xf32>
    %78 = arith.maximumf %76, %77 : vector<16x64xf32>
    %c576 = arith.constant 576 : index
    %c0_42 = arith.constant 0 : index
    %79 = vector.load %arg3[%c576, %c0_42] : memref<1024x256xbf16, #tpu.memory_space<vmem>>, vector<64x128xbf16>
    %c9 = arith.constant 9 : index
    %c0_43 = arith.constant 0 : index
    %80 = vector.load %arg4[%c9, %c0_43] : memref<12x256xf32, #tpu.memory_space<vmem>>, vector<1x128xf32>
    %81 = arith.truncf %78 : vector<16x64xf32> to vector<16x64xbf16>
    %cst_44 = arith.constant dense<0.000000e+00> : vector<16x128xf32>
    %82 = tpu.matmul %81, %79, %cst_44 {dimension_numbers = #tpu.dot_dimension_numbers<[1], [0], [0], [1], [0, 0, 1, 1], [], []>} : vector<16x64xbf16>, vector<64x128xbf16>, vector<16x128xf32> -> vector<16x128xf32>
    %83 = vector.broadcast %80 : vector<1x128xf32> to vector<16x128xf32>
    %84 = arith.addf %82, %83 : vector<16x128xf32>
    %cst_45 = arith.constant 0.000000e+00 : f32
    %85 = vector.broadcast %cst_45 : f32 to vector<16x128xf32>
    %86 = arith.maximumf %84, %85 : vector<16x128xf32>
    %c640 = arith.constant 640 : index
    %c0_46 = arith.constant 0 : index
    %87 = vector.load %arg3[%c640, %c0_46] : memref<1024x256xbf16, #tpu.memory_space<vmem>>, vector<128x256xbf16>
    %c10 = arith.constant 10 : index
    %c0_47 = arith.constant 0 : index
    %88 = vector.load %arg4[%c10, %c0_47] : memref<12x256xf32, #tpu.memory_space<vmem>>, vector<1x256xf32>
    %89 = arith.truncf %86 : vector<16x128xf32> to vector<16x128xbf16>
    %cst_48 = arith.constant dense<0.000000e+00> : vector<16x256xf32>
    %90 = tpu.matmul %89, %87, %cst_48 {dimension_numbers = #tpu.dot_dimension_numbers<[1], [0], [0], [1], [0, 0, 1, 1], [], []>} : vector<16x128xbf16>, vector<128x256xbf16>, vector<16x256xf32> -> vector<16x256xf32>
    %91 = vector.broadcast %88 : vector<1x256xf32> to vector<16x256xf32>
    %92 = arith.addf %90, %91 : vector<16x256xf32>
    %cst_49 = arith.constant 0.000000e+00 : f32
    %93 = vector.broadcast %cst_49 : f32 to vector<16x256xf32>
    %94 = arith.maximumf %92, %93 : vector<16x256xf32>
    %c768 = arith.constant 768 : index
    %c0_50 = arith.constant 0 : index
    %95 = vector.load %arg3[%c768, %c0_50] : memref<1024x256xbf16, #tpu.memory_space<vmem>>, vector<256x256xbf16>
    %c11 = arith.constant 11 : index
    %c0_51 = arith.constant 0 : index
    %96 = vector.load %arg4[%c11, %c0_51] : memref<12x256xf32, #tpu.memory_space<vmem>>, vector<1x256xf32>
    %97 = arith.truncf %94 : vector<16x256xf32> to vector<16x256xbf16>
    %cst_52 = arith.constant dense<0.000000e+00> : vector<16x256xf32>
    %98 = tpu.matmul %97, %95, %cst_52 {dimension_numbers = #tpu.dot_dimension_numbers<[1], [0], [0], [1], [0, 0, 1, 1], [], []>} : vector<16x256xbf16>, vector<256x256xbf16>, vector<16x256xf32> -> vector<16x256xf32>
    %99 = vector.broadcast %96 : vector<1x256xf32> to vector<16x256xf32>
    %100 = arith.addf %98, %99 : vector<16x256xf32>
    %c0_53 = arith.constant 0 : index
    %c0_54 = arith.constant 0 : index
    %101 = vector.load %arg5[%c0_53, %c0_54] : memref<16x256xf32, #tpu.memory_space<vmem>>, vector<16x256xf32>
    tpu.vector_store %arg5[%c0_53, %c0_54], %100 {strides = array<i32>} : memref<16x256xf32, #tpu.memory_space<vmem>>, vector<16x256xf32>,
    return
  }
  func.func @transform_0(%arg0: i32) -> (i32, i32) {
    %c0_i32 = arith.constant 0 : i32
    %c0_i32_0 = arith.constant 0 : i32
    return %arg0, %c0_i32 : i32, i32
  }
  func.func @transform_1(%arg0: i32) -> (i32, i32) {
    %c0_i32 = arith.constant 0 : i32
    %c0_i32_0 = arith.constant 0 : i32
    return %arg0, %c0_i32 : i32, i32
  }
  func.func @transform_2(%arg0: i32) -> (i32, i32) {
    %c0_i32 = arith.constant 0 : i32
    %c0_i32_0 = arith.constant 0 : i32
    %c0_i32_1 = arith.constant 0 : i32
    return %c0_i32, %c0_i32_0 : i32, i32
  }
  func.func @transform_3(%arg0: i32) -> (i32, i32) {
    %c0_i32 = arith.constant 0 : i32
    %c0_i32_0 = arith.constant 0 : i32
    %c0_i32_1 = arith.constant 0 : i32
    return %c0_i32, %c0_i32_0 : i32, i32
  }
  func.func @transform_4(%arg0: i32) -> (i32, i32) {
    %c0_i32 = arith.constant 0 : i32
    %c0_i32_0 = arith.constant 0 : i32
    return %arg0, %c0_i32 : i32, i32
  }
  func.func @transform_5(%arg0: i32) -> (i32, i32) {
    %c0_i32 = arith.constant 0 : i32
    %c0_i32_0 = arith.constant 0 : i32
    return %arg0, %c0_i32 : i32, i32
  }
}

</mosaic_0001>

<llo_original>
// kernel: vae_forward.1
$region0: #{vae_forward.1}
  #allocation0 [shape = 'u32[]', space=smem, size = 0x4, offset = 0x4, fixed_abs, tag = 'smem constant byte address 0x4 - core index']
  #allocation1 [shape = 'u32[144,128]{1,0:T(1,128)}', space=vmem, size = 0x12000, scoped, tag = 'internal scratch']
  %s0 = inlined_call_operand.vmem [shape: bf16[16,256], index: 0, kind: input, shape index: {}]
  %s1 = inlined_call_operand.vmem [shape: f32[16,8], index: 1, kind: input, shape index: {}]
  %s2 = inlined_call_operand.vmem [shape: bf16[1024,256], index: 2, kind: input, shape index: {}]
  %s3 = inlined_call_operand.vmem [shape: f32[12,256], index: 3, kind: input, shape index: {}]
  %s4 = inlined_call_operand.hbm [shape: f32[16,256], index: 4, kind: output, shape index: {0}]
  %s5 = inlined_call_operand.vmem [shape: f32[16,128], index: 5, kind: output, shape index: {1}]
  %6 = xla_tuple %s4, %s5
  %s7 = sld [smem:[#allocation0]]
  $region34: #{vae_forward.1} parent=0
    _
  %s9 = ssub.s32 1, %s7
  %s10 = scalar_select 0, %s9, %s7
  $region1: #{vae_forward.1} parent=0
    #allocation2 [shape = 'u8[16384]{0}', space=vmem, size = 0x4000, scoped, tag = 'output window, operand 0, single buffered']
    #allocation3 [shape = 's32[1]{0}', space=sflag, size = 0x4, scoped, tag = 'scoped memory for vae_forward.1']
    %11 = vsyncpa [#allocation3], 0
    // Predicated region
    $region2: #{vae_forward.1} parent=1 // pred_check
      _
    $region3: #{vae_forward.1} parent=1 // pred_check_branch
      %13 = sbr.rel (0) target = $region5
    $region4: #{vae_forward.1} parent=1 // pred_region
      _
    $region5: #{vae_forward.1} parent=1 // pred_fallthru
      _
    // Predicated region
    $region6: #{vae_forward.1} parent=1 // pred_check
      _
    $region7: #{vae_forward.1} parent=1 // pred_check_branch
      %15 = sbr.rel (0) target = $region9
    $region8: #{vae_forward.1} parent=1 // pred_region
      _
    $region9: #{vae_forward.1} parent=1 // pred_fallthru
      _
    // Predicated region
    $region10: #{vae_forward.1} parent=1 // pred_check
      _
    $region11: #{vae_forward.1} parent=1 // pred_check_branch
      %17 = sbr.rel (0) target = $region13
    $region12: #{vae_forward.1} parent=1 // pred_region
      _
    $region13: #{vae_forward.1} parent=1 // pred_fallthru
      _
    // Predicated region
    $region14: #{vae_forward.1} parent=1 // pred_check
      _
    $region15: #{vae_forward.1} parent=1 // pred_check_branch
      %19 = sbr.rel (0) target = $region17
    $region16: #{vae_forward.1} parent=1 // pred_region
      _
    $region17: #{vae_forward.1} parent=1 // pred_fallthru
      _
    %v21 = vld [vmem:[%s0] sm:$0xff]
    %v22 = vld [vmem:[%s0 + $0x8] sm:$0xff]
    %v23 = vld [vmem:[%s2] sm:$0xf]
    %v24 = vld [vmem:[%s2 + $0x8] sm:$0xf]
    %v25 = vld [vmem:[%s2 + $0x10] sm:$0xf]
    %v26 = vld [vmem:[%s2 + $0x18] sm:$0xf]
    %v27 = vld [vmem:[%s2 + $0x20] sm:$0xf]
    %v28 = vld [vmem:[%s2 + $0x28] sm:$0xf]
    %v29 = vld [vmem:[%s2 + $0x30] sm:$0xf]
    %v30 = vld [vmem:[%s2 + $0x38] sm:$0xf]
    %v31 = vld [vmem:[%s2 + $0x40] sm:$0xf]
    %v32 = vld [vmem:[%s2 + $0x48] sm:$0xf]
    %v33 = vld [vmem:[%s2 + $0x50] sm:$0xf]
    %v34 = vld [vmem:[%s2 + $0x58] sm:$0xf]
    %v35 = vld [vmem:[%s2 + $0x60] sm:$0xf]
    %v36 = vld [vmem:[%s2 + $0x68] sm:$0xf]
    %v37 = vld [vmem:[%s2 + $0x70] sm:$0xf]
    %v38 = vld [vmem:[%s2 + $0x78] sm:$0xf]
    %v39 = vld [vmem:[%s2 + $0x80] sm:$0xf]
    %v40 = vld [vmem:[%s2 + $0x88] sm:$0xf]
    %v41 = vld [vmem:[%s2 + $0x90] sm:$0xf]
    %v42 = vld [vmem:[%s2 + $0x98] sm:$0xf]
    %v43 = vld [vmem:[%s2 + $0xa0] sm:$0xf]
    %v44 = vld [vmem:[%s2 + $0xa8] sm:$0xf]
    %v45 = vld [vmem:[%s2 + $0xb0] sm:$0xf]
    %v46 = vld [vmem:[%s2 + $0xb8] sm:$0xf]
    %v47 = vld [vmem:[%s2 + $0xc0] sm:$0xf]
    %v48 = vld [vmem:[%s2 + $0xc8] sm:$0xf]
    %v49 = vld [vmem:[%s2 + $0xd0] sm:$0xf]
    %v50 = vld [vmem:[%s2 + $0xd8] sm:$0xf]
    %v51 = vld [vmem:[%s2 + $0xe0] sm:$0xf]
    %v52 = vld [vmem:[%s2 + $0xe8] sm:$0xf]
    %v53 = vld [vmem:[%s2 + $0xf0] sm:$0xf]
    %v54 = vld [vmem:[%s2 + $0xf8] sm:$0xf]
    %v55 = vld [vmem:[%s3] ss:$0 sm:$0xff]
    %v58 = vunpack.c.l.b16 %v21
    %v59 = vunpack.c.h.b16 %v21
    %v60 = vunpack.c.l.b16 %v22
    %v61 = vunpack.c.h.b16 %v22
    %v62 = vpack.c.b16 %v60, %v58
    %v63 = vpack.c.b16 %v61, %v59
    %v98 = vunpack.c.l.b16 %v23
    %v99 = vunpack.c.l.b16 %v24
    %v100 = vunpack.c.l.b16 %v25
    %v101 = vunpack.c.l.b16 %v26
    %v102 = vunpack.c.l.b16 %v27
    %v103 = vunpack.c.l.b16 %v28
    %v104 = vunpack.c.l.b16 %v29
    %v105 = vunpack.c.l.b16 %v30
    %v106 = vunpack.c.l.b16 %v31
    %v107 = vunpack.c.l.b16 %v32
    %v108 = vunpack.c.l.b16 %v33
    %v109 = vunpack.c.l.b16 %v34
    %v110 = vunpack.c.l.b16 %v35
    %v111 = vunpack.c.l.b16 %v36
    %v112 = vunpack.c.l.b16 %v37
    %v113 = vunpack.c.l.b16 %v38
    %v114 = vunpack.c.l.b16 %v39
    %v115 = vunpack.c.l.b16 %v40
    %v116 = vunpack.c.l.b16 %v41
    %v117 = vunpack.c.l.b16 %v42
    %v118 = vunpack.c.l.b16 %v43
    %v119 = vunpack.c.l.b16 %v44
    %v120 = vunpack.c.l.b16 %v45
    %v121 = vunpack.c.l.b16 %v46
    %v122 = vunpack.c.l.b16 %v47
    %v123 = vunpack.c.l.b16 %v48
    %v124 = vunpack.c.l.b16 %v49
    %v125 = vunpack.c.l.b16 %v50
    %v126 = vunpack.c.l.b16 %v51
    %v127 = vunpack.c.l.b16 %v52
    %v128 = vunpack.c.l.b16 %v53
    %v129 = vunpack.c.l.b16 %v54
    %v130 = vpack.c.b16 %v99, %v98
    %v131 = vpack.c.b16 %v101, %v100
    %v132 = vpack.c.b16 %v103, %v102
    %v133 = vpack.c.b16 %v105, %v104
    %v134 = vpack.c.b16 %v107, %v106
    %v135 = vpack.c.b16 %v109, %v108
    %v136 = vpack.c.b16 %v111, %v110
    %v137 = vpack.c.b16 %v113, %v112
    %v138 = vpack.c.b16 %v115, %v114
    %v139 = vpack.c.b16 %v117, %v116
    %v140 = vpack.c.b16 %v119, %v118
    %v141 = vpack.c.b16 %v121, %v120
    %v142 = vpack.c.b16 %v123, %v122
    %v143 = vpack.c.b16 %v125, %v124
    %v144 = vpack.c.b16 %v127, %v126
    %v145 = vpack.c.b16 %v129, %v128
    %162 = vmatprep.subr.bf16.mxu0 0
    %163 = vmatpush1.bf16.msra.mxu0 %v137
    %164 = vmatprep.subr.bf16.mxu0 0
    %165 = vmatpush1.bf16.msra.mxu0 %v136
    %166 = vmatprep.subr.bf16.mxu0 0
    %167 = vmatpush1.bf16.msra.mxu0 %v135
    %168 = vmatprep.subr.bf16.mxu0 0
    %169 = vmatpush1.bf16.msra.mxu0 %v134
    %170 = vmatprep.subr.bf16.mxu0 0
    %171 = vmatpush1.bf16.msra.mxu0 %v133
    %172 = vmatprep.subr.bf16.mxu0 0
    %173 = vmatpush1.bf16.msra.mxu0 %v132
    %174 = vmatprep.subr.bf16.mxu0 0
    %175 = vmatpush1.bf16.msra.mxu0 %v131
    %176 = vmatprep.subr.bf16.mxu0 0
    %177 = vmatpush1.bf16.msra.mxu0 %v130
    %178 = vmatprep.subr.bf16.mxu0 0
    %179 = vmatpush2.bf16.msra.mxu0 %v145
    %180 = vmatprep.subr.bf16.mxu0 0
    %181 = vmatpush2.bf16.msra.mxu0 %v144
    %182 = vmatprep.subr.bf16.mxu0 0
    %183 = vmatpush2.bf16.msra.mxu0 %v143
    %184 = vmatprep.subr.bf16.mxu0 0
    %185 = vmatpush2.bf16.msra.mxu0 %v142
    %186 = vmatprep.subr.bf16.mxu0 0
    %187 = vmatpush2.bf16.msra.mxu0 %v141
    %188 = vmatprep.subr.bf16.mxu0 0
    %189 = vmatpush2.bf16.msra.mxu0 %v140
    %190 = vmatprep.subr.bf16.mxu0 0
    %191 = vmatpush2.bf16.msra.mxu0 %v139
    %192 = vmatprep.subr.bf16.mxu0 0
    %193 = vmatpush2.bf16.msra.mxu0 %v138
    %194 = vmatprep.mubr.bf16.mxu0 %v63
    %195 = vmatmul.mubr.bf16.gmra.mxu0 %v62
    %v196 = vpop.f32.mrf.mxu0
    %v197 = vadd.f32 %v55, %v196
    %v198 = vpop.f32.mrf.mxu0
    %v199 = vpop.f32.mrf.mxu0
    %v200 = vadd.f32 %v55, %v199
    %v201 = vpop.f32.mrf.mxu0
    %202 = vdwg.mxu0
    %v203 = vmax.f32 %v197, 0.0
    %v204 = vmax.f32 %v200, 0.0
    %v205 = vld [vmem:[%s2 + $0x100] sm:$0xf]
    %v206 = vld [vmem:[%s2 + $0x108] sm:$0xf]
    %v207 = vld [vmem:[%s2 + $0x110] sm:$0xf]
    %v208 = vld [vmem:[%s2 + $0x118] sm:$0xf]
    %v209 = vld [vmem:[%s2 + $0x120] sm:$0xf]
    %v210 = vld [vmem:[%s2 + $0x128] sm:$0xf]
    %v211 = vld [vmem:[%s2 + $0x130] sm:$0xf]
    %v212 = vld [vmem:[%s2 + $0x138] sm:$0xf]
    %v213 = vld [vmem:[%s2 + $0x140] sm:$0xf]
    %v214 = vld [vmem:[%s2 + $0x148] sm:$0xf]
    %v215 = vld [vmem:[%s2 + $0x150] sm:$0xf]
    %v216 = vld [vmem:[%s2 + $0x158] sm:$0xf]
    %v217 = vld [vmem:[%s2 + $0x160] sm:$0xf]
    %v218 = vld [vmem:[%s2 + $0x168] sm:$0xf]
    %v219 = vld [vmem:[%s2 + $0x170] sm:$0xf]
    %v220 = vld [vmem:[%s2 + $0x178] sm:$0xf]
    %v221 = vld [vmem:[%s3 + $0x1] ss:$0 sm:$0xff]
    %v222 = vpack.c.bf16 %v204, %v203
    %v239 = vunpack.c.l.b16 %v205
    %v240 = vunpack.c.l.b16 %v206
    %v241 = vunpack.c.l.b16 %v207
    %v242 = vunpack.c.l.b16 %v208
    %v243 = vunpack.c.l.b16 %v209
    %v244 = vunpack.c.l.b16 %v210
    %v245 = vunpack.c.l.b16 %v211
    %v246 = vunpack.c.l.b16 %v212
    %v247 = vunpack.c.l.b16 %v213
    %v248 = vunpack.c.l.b16 %v214
    %v249 = vunpack.c.l.b16 %v215
    %v250 = vunpack.c.l.b16 %v216
    %v251 = vunpack.c.l.b16 %v217
    %v252 = vunpack.c.l.b16 %v218
    %v253 = vunpack.c.l.b16 %v219
    %v254 = vunpack.c.l.b16 %v220
    %v255 = vpack.c.b16 %v240, %v239
    %v256 = vpack.c.b16 %v242, %v241
    %v257 = vpack.c.b16 %v244, %v243
    %v258 = vpack.c.b16 %v246, %v245
    %v259 = vpack.c.b16 %v248, %v247
    %v260 = vpack.c.b16 %v250, %v249
    %v261 = vpack.c.b16 %v252, %v251
    %v262 = vpack.c.b16 %v254, %v253
    %271 = vmatprep.subr.bf16.mxu0 0
    %272 = vmatpush1.bf16.msra.mxu0 %v262
    %273 = vmatprep.subr.bf16.mxu0 0
    %274 = vmatpush1.bf16.msra.mxu0 %v261
    %275 = vmatprep.subr.bf16.mxu0 0
    %276 = vmatpush1.bf16.msra.mxu0 %v260
    %277 = vmatprep.subr.bf16.mxu0 0
    %278 = vmatpush1.bf16.msra.mxu0 %v259
    %279 = vmatprep.subr.bf16.mxu0 0
    %280 = vmatpush1.bf16.msra.mxu0 %v258
    %281 = vmatprep.subr.bf16.mxu0 0
    %282 = vmatpush1.bf16.msra.mxu0 %v257
    %283 = vmatprep.subr.bf16.mxu0 0
    %284 = vmatpush1.bf16.msra.mxu0 %v256
    %285 = vmatprep.subr.bf16.mxu0 0
    %286 = vmatpush1.bf16.msra.mxu0 %v255
    %287 = vmatprep.subr.bf16.mxu0 0
    %288 = vmatpush2.bf16.msra.mxu0 0
    %289 = vmatprep.subr.bf16.mxu0 0
    %290 = vmatpush2.bf16.msra.mxu0 0
    %291 = vmatprep.subr.bf16.mxu0 0
    %292 = vmatpush2.bf16.msra.mxu0 0
    %293 = vmatprep.subr.bf16.mxu0 0
    %294 = vmatpush2.bf16.msra.mxu0 0
    %295 = vmatprep.subr.bf16.mxu0 0
    %296 = vmatpush2.bf16.msra.mxu0 0
    %297 = vmatprep.subr.bf16.mxu0 0
    %298 = vmatpush2.bf16.msra.mxu0 0
    %299 = vmatprep.subr.bf16.mxu0 0
    %300 = vmatpush2.bf16.msra.mxu0 0
    %301 = vmatprep.subr.bf16.mxu0 0
    %302 = vmatpush2.bf16.msra.mxu0 0
    %303 = vmatprep.mubr.bf16.mxu0 0
    %304 = vmatmul.mubr.bf16.gmra.mxu0 %v222
    %v305 = vpop.f32.mrf.mxu0
    %v306 = vadd.f32 %v221, %v305
    %v307 = vpop.f32.mrf.mxu0
    %v308 = vpop.f32.mrf.mxu0
    %v309 = vadd.f32 %v221, %v308
    %v310 = vpop.f32.mrf.mxu0
    %311 = vdwg.mxu0
    %v312 = vmax.f32 %v306, 0.0
    %v313 = vmax.f32 %v309, 0.0
    %v314 = vld [vmem:[%s2 + $0x180] sm:$0xf]
    %v315 = vld [vmem:[%s2 + $0x188] sm:$0xf]
    %v316 = vld [vmem:[%s2 + $0x190] sm:$0xf]
    %v317 = vld [vmem:[%s2 + $0x198] sm:$0xf]
    %v318 = vld [vmem:[%s2 + $0x1a0] sm:$0xf]
    %v319 = vld [vmem:[%s2 + $0x1a8] sm:$0xf]
    %v320 = vld [vmem:[%s2 + $0x1b0] sm:$0xf]
    %v321 = vld [vmem:[%s2 + $0x1b8] sm:$0xf]
    %v322 = vld [vmem:[%s3 + $0x2] ss:$0 sm:$0xff]
    %v323 = vpack.c.bf16 %v313, %v312
    %v332 = vunpack.c.l.b16 %v314
    %v333 = vunpack.c.l.b16 %v315
    %v334 = vunpack.c.l.b16 %v316
    %v335 = vunpack.c.l.b16 %v317
    %v336 = vunpack.c.l.b16 %v318
    %v337 = vunpack.c.l.b16 %v319
    %v338 = vunpack.c.l.b16 %v320
    %v339 = vunpack.c.l.b16 %v321
    %v340 = vpack.c.b16 %v333, %v332
    %v341 = vpack.c.b16 %v335, %v334
    %v342 = vpack.c.b16 %v337, %v336
    %v343 = vpack.c.b16 %v339, %v338
    %vm348 = vcmask 523264
    %v350 = vsel %vm348, %v323, 0
    %352 = vmatprep.subr.bf16.mxu0 0
    %353 = vmatpush1.bf16.msra.mxu0 0
    %354 = vmatprep.subr.bf16.mxu0 0
    %355 = vmatpush1.bf16.msra.mxu0 0
    %356 = vmatprep.subr.bf16.mxu0 0
    %357 = vmatpush1.bf16.msra.mxu0 0
    %358 = vmatprep.subr.bf16.mxu0 0
    %359 = vmatpush1.bf16.msra.mxu0 0
    %360 = vmatprep.subr.bf16.mxu0 0
    %361 = vmatpush1.bf16.msra.mxu0 %v343
    %362 = vmatprep.subr.bf16.mxu0 0
    %363 = vmatpush1.bf16.msra.mxu0 %v342
    %364 = vmatprep.subr.bf16.mxu0 0
    %365 = vmatpush1.bf16.msra.mxu0 %v341
    %366 = vmatprep.subr.bf16.mxu0 0
    %367 = vmatpush1.bf16.msra.mxu0 %v340
    %368 = vmatprep.subr.bf16.mxu0 0
    %369 = vmatpush2.bf16.msra.mxu0 0
    %370 = vmatprep.subr.bf16.mxu0 0
    %371 = vmatpush2.bf16.msra.mxu0 0
    %372 = vmatprep.subr.bf16.mxu0 0
    %373 = vmatpush2.bf16.msra.mxu0 0
    %374 = vmatprep.subr.bf16.mxu0 0
    %375 = vmatpush2.bf16.msra.mxu0 0
    %376 = vmatprep.subr.bf16.mxu0 0
    %377 = vmatpush2.bf16.msra.mxu0 0
    %378 = vmatprep.subr.bf16.mxu0 0
    %379 = vmatpush2.bf16.msra.mxu0 0
    %380 = vmatprep.subr.bf16.mxu0 0
    %381 = vmatpush2.bf16.msra.mxu0 0
    %382 = vmatprep.subr.bf16.mxu0 0
    %383 = vmatpush2.bf16.msra.mxu0 0
    %384 = vmatprep.mubr.bf16.mxu0 0
    %385 = vmatmul.mubr.bf16.gmra.mxu0 %v350
    %v386 = vpop.f32.mrf.mxu0
    %v387 = vadd.f32 %v322, %v386
    %v388 = vpop.f32.mrf.mxu0
    %v389 = vpop.f32.mrf.mxu0
    %v390 = vadd.f32 %v322, %v389
    %v391 = vpop.f32.mrf.mxu0
    %392 = vdwg.mxu0
    %v393 = vmax.f32 %v387, 0.0
    %v394 = vmax.f32 %v390, 0.0
    %v395 = vld [vmem:[%s2 + $0x1c0] sm:$0xf]
    %v396 = vld [vmem:[%s2 + $0x1c8] sm:$0xf]
    %v397 = vld [vmem:[%s2 + $0x1d0] sm:$0xf]
    %v398 = vld [vmem:[%s2 + $0x1d8] sm:$0xf]
    %v399 = vld [vmem:[%s3 + $0x3] ss:$0 sm:$0xff]
    %v400 = vpack.c.bf16 %v394, %v393
    %v405 = vunpack.c.l.b16 %v395
    %v406 = vunpack.c.l.b16 %v396
    %v407 = vunpack.c.l.b16 %v397
    %v408 = vunpack.c.l.b16 %v398
    %v409 = vpack.c.b16 %v406, %v405
    %v410 = vpack.c.b16 %v408, %v407
    %vm413 = vcmask 261120
    %v415 = vsel %vm413, %v400, 0
    %417 = vmatprep.subr.bf16.mxu0 0
    %418 = vmatpush1.bf16.msra.mxu0 0
    %419 = vmatprep.subr.bf16.mxu0 0
    %420 = vmatpush1.bf16.msra.mxu0 0
    %421 = vmatprep.subr.bf16.mxu0 0
    %422 = vmatpush1.bf16.msra.mxu0 0
    %423 = vmatprep.subr.bf16.mxu0 0
    %424 = vmatpush1.bf16.msra.mxu0 0
    %425 = vmatprep.subr.bf16.mxu0 0
    %426 = vmatpush1.bf16.msra.mxu0 0
    %427 = vmatprep.subr.bf16.mxu0 0
    %428 = vmatpush1.bf16.msra.mxu0 0
    %429 = vmatprep.subr.bf16.mxu0 0
    %430 = vmatpush1.bf16.msra.mxu0 %v410
    %431 = vmatprep.subr.bf16.mxu0 0
    %432 = vmatpush1.bf16.msra.mxu0 %v409
    %433 = vmatprep.subr.bf16.mxu0 0
    %434 = vmatpush2.bf16.msra.mxu0 0
    %435 = vmatprep.subr.bf16.mxu0 0
    %436 = vmatpush2.bf16.msra.mxu0 0
    %437 = vmatprep.subr.bf16.mxu0 0
    %438 = vmatpush2.bf16.msra.mxu0 0
    %439 = vmatprep.subr.bf16.mxu0 0
    %440 = vmatpush2.bf16.msra.mxu0 0
    %441 = vmatprep.subr.bf16.mxu0 0
    %442 = vmatpush2.bf16.msra.mxu0 0
    %443 = vmatprep.subr.bf16.mxu0 0
    %444 = vmatpush2.bf16.msra.mxu0 0
    %445 = vmatprep.subr.bf16.mxu0 0
    %446 = vmatpush2.bf16.msra.mxu0 0
    %447 = vmatprep.subr.bf16.mxu0 0
    %448 = vmatpush2.bf16.msra.mxu0 0
    %449 = vmatprep.mubr.bf16.mxu0 0
    %450 = vmatmul.mubr.bf16.gmra.mxu0 %v415
    %v451 = vpop.f32.mrf.mxu0
    %v452 = vadd.f32 %v399, %v451
    %v453 = vpop.f32.mrf.mxu0
    %v454 = vpop.f32.mrf.mxu0
    %v455 = vadd.f32 %v399, %v454
    %v456 = vpop.f32.mrf.mxu0
    %457 = vdwg.mxu0
    %v458 = vmax.f32 %v452, 0.0
    %v459 = vmax.f32 %v455, 0.0
    %v460 = vld [vmem:[%s2 + $0x1e0] sm:$0xf]
    %v461 = vld [vmem:[%s2 + $0x1e8] sm:$0xf]
    %v462 = vld [vmem:[%s3 + $0x4] ss:$0 sm:$0xff]
    %v463 = vpack.c.bf16 %v459, %v458
    %v466 = vunpack.c.l.b16 %v460
    %v467 = vunpack.c.l.b16 %v461
    %v468 = vpack.c.b16 %v467, %v466
    %vm470 = vcmask 130048
    %v472 = vsel %vm470, %v463, 0
    %474 = vmatprep.subr.bf16.mxu0 0
    %475 = vmatpush1.bf16.msra.mxu0 0
    %476 = vmatprep.subr.bf16.mxu0 0
    %477 = vmatpush1.bf16.msra.mxu0 0
    %478 = vmatprep.subr.bf16.mxu0 0
    %479 = vmatpush1.bf16.msra.mxu0 0
    %480 = vmatprep.subr.bf16.mxu0 0
    %481 = vmatpush1.bf16.msra.mxu0 0
    %482 = vmatprep.subr.bf16.mxu0 0
    %483 = vmatpush1.bf16.msra.mxu0 0
    %484 = vmatprep.subr.bf16.mxu0 0
    %485 = vmatpush1.bf16.msra.mxu0 0
    %486 = vmatprep.subr.bf16.mxu0 0
    %487 = vmatpush1.bf16.msra.mxu0 0
    %488 = vmatprep.subr.bf16.mxu0 0
    %489 = vmatpush1.bf16.msra.mxu0 %v468
    %490 = vmatprep.subr.bf16.mxu0 0
    %491 = vmatpush2.bf16.msra.mxu0 0
    %492 = vmatprep.subr.bf16.mxu0 0
    %493 = vmatpush2.bf16.msra.mxu0 0
    %494 = vmatprep.subr.bf16.mxu0 0
    %495 = vmatpush2.bf16.msra.mxu0 0
    %496 = vmatprep.subr.bf16.mxu0 0
    %497 = vmatpush2.bf16.msra.mxu0 0
    %498 = vmatprep.subr.bf16.mxu0 0
    %499 = vmatpush2.bf16.msra.mxu0 0
    %500 = vmatprep.subr.bf16.mxu0 0
    %501 = vmatpush2.bf16.msra.mxu0 0
    %502 = vmatprep.subr.bf16.mxu0 0
    %503 = vmatpush2.bf16.msra.mxu0 0
    %504 = vmatprep.subr.bf16.mxu0 0
    %505 = vmatpush2.bf16.msra.mxu0 0
    %506 = vmatprep.mubr.bf16.mxu0 0
    %507 = vmatmul.mubr.bf16.gmra.mxu0 %v472
    %v508 = vpop.f32.mrf.mxu0
    %v509 = vadd.f32 %v462, %v508
    %v510 = vpop.f32.mrf.mxu0
    %v511 = vpop.f32.mrf.mxu0
    %v512 = vadd.f32 %v462, %v511
    %v513 = vpop.f32.mrf.mxu0
    %514 = vdwg.mxu0
    %v515 = vmax.f32 %v509, 0.0
    %v516 = vmax.f32 %v512, 0.0
    %v517 = vld [vmem:[%s2 + $0x1f0] sm:$0xf]
    %v518 = vld [vmem:[%s2 + $0x1f8] sm:$0xf]
    %v519 = vld [vmem:[%s3 + $0x5] ss:$0 sm:$0xff]
    %v520 = vpack.c.bf16 %v516, %v515
    %v523 = vunpack.c.l.b16 %v517
    %v524 = vunpack.c.l.b16 %v518
    %v525 = vpack.c.b16 %v524, %v523
    %v528 = vsel %vm470, %v520, 0
    %530 = vmatprep.subr.bf16.mxu0 0
    %531 = vmatpush1.bf16.msra.mxu0 0
    %532 = vmatprep.subr.bf16.mxu0 0
    %533 = vmatpush1.bf16.msra.mxu0 0
    %534 = vmatprep.subr.bf16.mxu0 0
    %535 = vmatpush1.bf16.msra.mxu0 0
    %536 = vmatprep.subr.bf16.mxu0 0
    %537 = vmatpush1.bf16.msra.mxu0 0
    %538 = vmatprep.subr.bf16.mxu0 0
    %539 = vmatpush1.bf16.msra.mxu0 0
    %540 = vmatprep.subr.bf16.mxu0 0
    %541 = vmatpush1.bf16.msra.mxu0 0
    %542 = vmatprep.subr.bf16.mxu0 0
    %543 = vmatpush1.bf16.msra.mxu0 0
    %544 = vmatprep.subr.bf16.mxu0 0
    %545 = vmatpush1.bf16.msra.mxu0 %v525
    %546 = vmatprep.subr.bf16.mxu0 0
    %547 = vmatpush2.bf16.msra.mxu0 0
    %548 = vmatprep.subr.bf16.mxu0 0
    %549 = vmatpush2.bf16.msra.mxu0 0
    %550 = vmatprep.subr.bf16.mxu0 0
    %551 = vmatpush2.bf16.msra.mxu0 0
    %552 = vmatprep.subr.bf16.mxu0 0
    %553 = vmatpush2.bf16.msra.mxu0 0
    %554 = vmatprep.subr.bf16.mxu0 0
    %555 = vmatpush2.bf16.msra.mxu0 0
    %556 = vmatprep.subr.bf16.mxu0 0
    %557 = vmatpush2.bf16.msra.mxu0 0
    %558 = vmatprep.subr.bf16.mxu0 0
    %559 = vmatpush2.bf16.msra.mxu0 0
    %560 = vmatprep.subr.bf16.mxu0 0
    %561 = vmatpush2.bf16.msra.mxu0 0
    %562 = vmatprep.mubr.bf16.mxu0 0
    %563 = vmatmul.mubr.bf16.gmra.mxu0 %v528
    %v564 = vpop.f32.mrf.mxu0
    %v565 = vadd.f32 %v519, %v564
    %v566 = vpop.f32.mrf.mxu0
    %v567 = vpop.f32.mrf.mxu0
    %v568 = vadd.f32 %v519, %v567
    %v569 = vpop.f32.mrf.mxu0
    %570 = vdwg.mxu0
    %571 = vst [vmem:[%s5] sm:$0xff] %v565
    %572 = vst [vmem:[%s5 + $0x8] sm:$0xff] %v568
    %v573 = vmul.f32 %v565, 0.5
    %v574 = vmul.f32 %v568, 0.5
    %v575 = vmul.f32 %v573, 1.442695
    %v576 = vpow.pop %v575
    %v577 = vmul.f32 %v574, 1.442695
    %v578 = vpow.pop %v577
    %v579 = vld [vmem:[%s1] sm:$0xff]
    %v580 = vld [vmem:[%s1 + $0x8] sm:$0xff]
    %583 = vrot.lane.b32.xlu0 %v576, 120
    %v584 = vpop.permute.xlu0 %583
    %585 = vrot.lane.b32.xlu0 %v578, 120
    %v586 = vpop.permute.xlu0 %585
    %v589 = vmul.f32 %v579, %v584
    %v590 = vmul.f32 %v580, %v586
    %v591 = vadd.f32 %v565, %v589
    %v592 = vadd.f32 %v568, %v590
    %v593 = vld [vmem:[%s2 + $0x200] sm:$0xf]
    %v594 = vld [vmem:[%s3 + $0x6] ss:$0 sm:$0xff]
    %v595 = vpack.c.bf16 %v592, %v591
    %vm596 = vcmask 64512
    %v598 = vsel %vm596, %v595, 0
    %vm600 = vcmask 1043456
    %v602 = vsel %vm600, %v593, 0
    %604 = vmatprep.subr.bf16.mxu0 0
    %605 = vmatpush1.bf16.msra.mxu0 0
    %606 = vmatprep.subr.bf16.mxu0 0
    %607 = vmatpush1.bf16.msra.mxu0 0
    %608 = vmatprep.subr.bf16.mxu0 0
    %609 = vmatpush1.bf16.msra.mxu0 0
    %610 = vmatprep.subr.bf16.mxu0 0
    %611 = vmatpush1.bf16.msra.mxu0 0
    %612 = vmatprep.subr.bf16.mxu0 0
    %613 = vmatpush1.bf16.msra.mxu0 0
    %614 = vmatprep.subr.bf16.mxu0 0
    %615 = vmatpush1.bf16.msra.mxu0 0
    %616 = vmatprep.subr.bf16.mxu0 0
    %617 = vmatpush1.bf16.msra.mxu0 0
    %618 = vmatprep.subr.bf16.mxu0 0
    %619 = vmatpush1.bf16.msra.mxu0 %v602
    %620 = vmatprep.subr.bf16.mxu0 0
    %621 = vmatpush2.bf16.msra.mxu0 0
    %622 = vmatprep.subr.bf16.mxu0 0
    %623 = vmatpush2.bf16.msra.mxu0 0
    %624 = vmatprep.subr.bf16.mxu0 0
    %625 = vmatpush2.bf16.msra.mxu0 0
    %626 = vmatprep.subr.bf16.mxu0 0
    %627 = vmatpush2.bf16.msra.mxu0 0
    %628 = vmatprep.subr.bf16.mxu0 0
    %629 = vmatpush2.bf16.msra.mxu0 0
    %630 = vmatprep.subr.bf16.mxu0 0
    %631 = vmatpush2.bf16.msra.mxu0 0
    %632 = vmatprep.subr.bf16.mxu0 0
    %633 = vmatpush2.bf16.msra.mxu0 0
    %634 = vmatprep.subr.bf16.mxu0 0
    %635 = vmatpush2.bf16.msra.mxu0 0
    %636 = vmatprep.mubr.bf16.mxu0 0
    %637 = vmatmul.mubr.bf16.gmra.mxu0 %v598
    %v638 = vpop.f32.mrf.mxu0
    %v639 = vadd.f32 %v594, %v638
    %v640 = vpop.f32.mrf.mxu0
    %v641 = vpop.f32.mrf.mxu0
    %v642 = vadd.f32 %v594, %v641
    %v643 = vpop.f32.mrf.mxu0
    %644 = vdwg.mxu0
    %v645 = vmax.f32 %v639, 0.0
    %v646 = vmax.f32 %v642, 0.0
    %v647 = vld [vmem:[%s2 + $0x210] sm:$0xf]
    %v648 = vld [vmem:[%s2 + $0x218] sm:$0xf]
    %v649 = vld [vmem:[%s3 + $0x7] ss:$0 sm:$0xff]
    %v650 = vpack.c.bf16 %v646, %v645
    %v653 = vunpack.c.l.b16 %v647
    %v654 = vunpack.c.l.b16 %v648
    %v655 = vpack.c.b16 %v654, %v653
    %v658 = vsel %vm470, %v650, 0
    %660 = vmatprep.subr.bf16.mxu0 0
    %661 = vmatpush1.bf16.msra.mxu0 0
    %662 = vmatprep.subr.bf16.mxu0 0
    %663 = vmatpush1.bf16.msra.mxu0 0
    %664 = vmatprep.subr.bf16.mxu0 0
    %665 = vmatpush1.bf16.msra.mxu0 0
    %666 = vmatprep.subr.bf16.mxu0 0
    %667 = vmatpush1.bf16.msra.mxu0 0
    %668 = vmatprep.subr.bf16.mxu0 0
    %669 = vmatpush1.bf16.msra.mxu0 0
    %670 = vmatprep.subr.bf16.mxu0 0
    %671 = vmatpush1.bf16.msra.mxu0 0
    %672 = vmatprep.subr.bf16.mxu0 0
    %673 = vmatpush1.bf16.msra.mxu0 0
    %674 = vmatprep.subr.bf16.mxu0 0
    %675 = vmatpush1.bf16.msra.mxu0 %v655
    %676 = vmatprep.subr.bf16.mxu0 0
    %677 = vmatpush2.bf16.msra.mxu0 0
    %678 = vmatprep.subr.bf16.mxu0 0
    %679 = vmatpush2.bf16.msra.mxu0 0
    %680 = vmatprep.subr.bf16.mxu0 0
    %681 = vmatpush2.bf16.msra.mxu0 0
    %682 = vmatprep.subr.bf16.mxu0 0
    %683 = vmatpush2.bf16.msra.mxu0 0
    %684 = vmatprep.subr.bf16.mxu0 0
    %685 = vmatpush2.bf16.msra.mxu0 0
    %686 = vmatprep.subr.bf16.mxu0 0
    %687 = vmatpush2.bf16.msra.mxu0 0
    %688 = vmatprep.subr.bf16.mxu0 0
    %689 = vmatpush2.bf16.msra.mxu0 0
    %690 = vmatprep.subr.bf16.mxu0 0
    %691 = vmatpush2.bf16.msra.mxu0 0
    %692 = vmatprep.mubr.bf16.mxu0 0
    %693 = vmatmul.mubr.bf16.gmra.mxu0 %v658
    %v694 = vpop.f32.mrf.mxu0
    %v695 = vadd.f32 %v649, %v694
    %v696 = vpop.f32.mrf.mxu0
    %v697 = vpop.f32.mrf.mxu0
    %v698 = vadd.f32 %v649, %v697
    %v699 = vpop.f32.mrf.mxu0
    %700 = vdwg.mxu0
    %v701 = vmax.f32 %v695, 0.0
    %v702 = vmax.f32 %v698, 0.0
    %v703 = vld [vmem:[%s2 + $0x220] sm:$0xf]
    %v704 = vld [vmem:[%s2 + $0x228] sm:$0xf]
    %v705 = vld [vmem:[%s2 + $0x230] sm:$0xf]
    %v706 = vld [vmem:[%s2 + $0x238] sm:$0xf]
    %v707 = vld [vmem:[%s3 + $0x10] ss:$0 sm:$0xff]
    %v708 = vpack.c.bf16 %v702, %v701
    %v713 = vunpack.c.l.b16 %v703
    %v714 = vunpack.c.l.b16 %v704
    %v715 = vunpack.c.l.b16 %v705
    %v716 = vunpack.c.l.b16 %v706
    %v717 = vpack.c.b16 %v714, %v713
    %v718 = vpack.c.b16 %v716, %v715
    %v722 = vsel %vm413, %v708, 0
    %724 = vmatprep.subr.bf16.mxu0 0
    %725 = vmatpush1.bf16.msra.mxu0 0
    %726 = vmatprep.subr.bf16.mxu0 0
    %727 = vmatpush1.bf16.msra.mxu0 0
    %728 = vmatprep.subr.bf16.mxu0 0
    %729 = vmatpush1.bf16.msra.mxu0 0
    %730 = vmatprep.subr.bf16.mxu0 0
    %731 = vmatpush1.bf16.msra.mxu0 0
    %732 = vmatprep.subr.bf16.mxu0 0
    %733 = vmatpush1.bf16.msra.mxu0 0
    %734 = vmatprep.subr.bf16.mxu0 0
    %735 = vmatpush1.bf16.msra.mxu0 0
    %736 = vmatprep.subr.bf16.mxu0 0
    %737 = vmatpush1.bf16.msra.mxu0 %v718
    %738 = vmatprep.subr.bf16.mxu0 0
    %739 = vmatpush1.bf16.msra.mxu0 %v717
    %740 = vmatprep.subr.bf16.mxu0 0
    %741 = vmatpush2.bf16.msra.mxu0 0
    %742 = vmatprep.subr.bf16.mxu0 0
    %743 = vmatpush2.bf16.msra.mxu0 0
    %744 = vmatprep.subr.bf16.mxu0 0
    %745 = vmatpush2.bf16.msra.mxu0 0
    %746 = vmatprep.subr.bf16.mxu0 0
    %747 = vmatpush2.bf16.msra.mxu0 0
    %748 = vmatprep.subr.bf16.mxu0 0
    %749 = vmatpush2.bf16.msra.mxu0 0
    %750 = vmatprep.subr.bf16.mxu0 0
    %751 = vmatpush2.bf16.msra.mxu0 0
    %752 = vmatprep.subr.bf16.mxu0 0
    %753 = vmatpush2.bf16.msra.mxu0 0
    %754 = vmatprep.subr.bf16.mxu0 0
    %755 = vmatpush2.bf16.msra.mxu0 0
    %756 = vmatprep.mubr.bf16.mxu0 0
    %757 = vmatmul.mubr.bf16.gmra.mxu0 %v722
    %v758 = vpop.f32.mrf.mxu0
    %v759 = vadd.f32 %v707, %v758
    %v760 = vpop.f32.mrf.mxu0
    %v761 = vpop.f32.mrf.mxu0
    %v762 = vadd.f32 %v707, %v761
    %v763 = vpop.f32.mrf.mxu0
    %764 = vdwg.mxu0
    %v765 = vmax.f32 %v759, 0.0
    %v766 = vmax.f32 %v762, 0.0
    %v767 = vld [vmem:[%s2 + $0x240] sm:$0xf]
    %v768 = vld [vmem:[%s2 + $0x248] sm:$0xf]
    %v769 = vld [vmem:[%s2 + $0x250] sm:$0xf]
    %v770 = vld [vmem:[%s2 + $0x258] sm:$0xf]
    %v771 = vld [vmem:[%s2 + $0x260] sm:$0xf]
    %v772 = vld [vmem:[%s2 + $0x268] sm:$0xf]
    %v773 = vld [vmem:[%s2 + $0x270] sm:$0xf]
    %v774 = vld [vmem:[%s2 + $0x278] sm:$0xf]
    %v775 = vld [vmem:[%s3 + $0x11] ss:$0 sm:$0xff]
    %v776 = vpack.c.bf16 %v766, %v765
    %v785 = vunpack.c.l.b16 %v767
    %v786 = vunpack.c.l.b16 %v768
    %v787 = vunpack.c.l.b16 %v769
    %v788 = vunpack.c.l.b16 %v770
    %v789 = vunpack.c.l.b16 %v771
    %v790 = vunpack.c.l.b16 %v772
    %v791 = vunpack.c.l.b16 %v773
    %v792 = vunpack.c.l.b16 %v774
    %v793 = vpack.c.b16 %v786, %v785
    %v794 = vpack.c.b16 %v788, %v787
    %v795 = vpack.c.b16 %v790, %v789
    %v796 = vpack.c.b16 %v792, %v791
    %v802 = vsel %vm348, %v776, 0
    %804 = vmatprep.subr.bf16.mxu0 0
    %805 = vmatpush1.bf16.msra.mxu0 0
    %806 = vmatprep.subr.bf16.mxu0 0
    %807 = vmatpush1.bf16.msra.mxu0 0
    %808 = vmatprep.subr.bf16.mxu0 0
    %809 = vmatpush1.bf16.msra.mxu0 0
    %810 = vmatprep.subr.bf16.mxu0 0
    %811 = vmatpush1.bf16.msra.mxu0 0
    %812 = vmatprep.subr.bf16.mxu0 0
    %813 = vmatpush1.bf16.msra.mxu0 %v796
    %814 = vmatprep.subr.bf16.mxu0 0
    %815 = vmatpush1.bf16.msra.mxu0 %v795
    %816 = vmatprep.subr.bf16.mxu0 0
    %817 = vmatpush1.bf16.msra.mxu0 %v794
    %818 = vmatprep.subr.bf16.mxu0 0
    %819 = vmatpush1.bf16.msra.mxu0 %v793
    %820 = vmatprep.subr.bf16.mxu0 0
    %821 = vmatpush2.bf16.msra.mxu0 0
    %822 = vmatprep.subr.bf16.mxu0 0
    %823 = vmatpush2.bf16.msra.mxu0 0
    %824 = vmatprep.subr.bf16.mxu0 0
    %825 = vmatpush2.bf16.msra.mxu0 0
    %826 = vmatprep.subr.bf16.mxu0 0
    %827 = vmatpush2.bf16.msra.mxu0 0
    %828 = vmatprep.subr.bf16.mxu0 0
    %829 = vmatpush2.bf16.msra.mxu0 0
    %830 = vmatprep.subr.bf16.mxu0 0
    %831 = vmatpush2.bf16.msra.mxu0 0
    %832 = vmatprep.subr.bf16.mxu0 0
    %833 = vmatpush2.bf16.msra.mxu0 0
    %834 = vmatprep.subr.bf16.mxu0 0
    %835 = vmatpush2.bf16.msra.mxu0 0
    %836 = vmatprep.mubr.bf16.mxu0 0
    %837 = vmatmul.mubr.bf16.gmra.mxu0 %v802
    %v838 = vpop.f32.mrf.mxu0
    %v839 = vadd.f32 %v775, %v838
    %v840 = vpop.f32.mrf.mxu0
    %v841 = vpop.f32.mrf.mxu0
    %v842 = vadd.f32 %v775, %v841
    %v843 = vpop.f32.mrf.mxu0
    %844 = vdwg.mxu0
    %v845 = vmax.f32 %v839, 0.0
    %v846 = vmax.f32 %v842, 0.0
    %v847 = vld [vmem:[%s2 + $0x280] sm:$0xff]
    %v848 = vld [vmem:[%s2 + $0x288] sm:$0xff]
    %v849 = vld [vmem:[%s2 + $0x290] sm:$0xff]
    %v850 = vld [vmem:[%s2 + $0x298] sm:$0xff]
    %v851 = vld [vmem:[%s2 + $0x2a0] sm:$0xff]
    %v852 = vld [vmem:[%s2 + $0x2a8] sm:$0xff]
    %v853 = vld [vmem:[%s2 + $0x2b0] sm:$0xff]
    %v854 = vld [vmem:[%s2 + $0x2b8] sm:$0xff]
    %v855 = vld [vmem:[%s2 + $0x2c0] sm:$0xff]
    %v856 = vld [vmem:[%s2 + $0x2c8] sm:$0xff]
    %v857 = vld [vmem:[%s2 + $0x2d0] sm:$0xff]
    %v858 = vld [vmem:[%s2 + $0x2d8] sm:$0xff]
    %v859 = vld [vmem:[%s2 + $0x2e0] sm:$0xff]
    %v860 = vld [vmem:[%s2 + $0x2e8] sm:$0xff]
    %v861 = vld [vmem:[%s2 + $0x2f0] sm:$0xff]
    %v862 = vld [vmem:[%s2 + $0x2f8] sm:$0xff]
    %s863 = scalar_lea.vmem %s3, 18
    %v864 = vld [vmem:[%s863] ss:$8 sm:$0x3]
    %v865 = vpack.c.bf16 %v846, %v845
    %v867 = vlaneseq
    %v868 = vshrl.u32 %v867, 7
    %v869 = vsub.s32 0, %v868
    %v870 = vrot.slane %v864, %v869
    %v871 = vlaneseq
    %v872 = vshrl.u32 %v871, 7
    %v873 = vsub.s32 1, %v872
    %v874 = vrot.slane %v864, %v873
    %v893 = vunpack.c.l.b16 %v847
    %v894 = vunpack.c.h.b16 %v847
    %v895 = vunpack.c.l.b16 %v848
    %v896 = vunpack.c.h.b16 %v848
    %v897 = vunpack.c.l.b16 %v849
    %v898 = vunpack.c.h.b16 %v849
    %v899 = vunpack.c.l.b16 %v850
    %v900 = vunpack.c.h.b16 %v850
    %v901 = vunpack.c.l.b16 %v851
    %v902 = vunpack.c.h.b16 %v851
    %v903 = vunpack.c.l.b16 %v852
    %v904 = vunpack.c.h.b16 %v852
    %v905 = vunpack.c.l.b16 %v853
    %v906 = vunpack.c.h.b16 %v853
    %v907 = vunpack.c.l.b16 %v854
    %v908 = vunpack.c.h.b16 %v854
    %v909 = vunpack.c.l.b16 %v855
    %v910 = vunpack.c.h.b16 %v855
    %v911 = vunpack.c.l.b16 %v856
    %v912 = vunpack.c.h.b16 %v856
    %v913 = vunpack.c.l.b16 %v857
    %v914 = vunpack.c.h.b16 %v857
    %v915 = vunpack.c.l.b16 %v858
    %v916 = vunpack.c.h.b16 %v858
    %v917 = vunpack.c.l.b16 %v859
    %v918 = vunpack.c.h.b16 %v859
    %v919 = vunpack.c.l.b16 %v860
    %v920 = vunpack.c.h.b16 %v860
    %v921 = vunpack.c.l.b16 %v861
    %v922 = vunpack.c.h.b16 %v861
    %v923 = vunpack.c.l.b16 %v862
    %v924 = vunpack.c.h.b16 %v862
    %v925 = vpack.c.b16 %v895, %v893
    %v926 = vpack.c.b16 %v896, %v894
    %v927 = vpack.c.b16 %v899, %v897
    %v928 = vpack.c.b16 %v900, %v898
    %v929 = vpack.c.b16 %v903, %v901
    %v930 = vpack.c.b16 %v904, %v902
    %v931 = vpack.c.b16 %v907, %v905
    %v932 = vpack.c.b16 %v908, %v906
    %v933 = vpack.c.b16 %v911, %v909
    %v934 = vpack.c.b16 %v912, %v910
    %v935 = vpack.c.b16 %v915, %v913
    %v936 = vpack.c.b16 %v916, %v914
    %v937 = vpack.c.b16 %v919, %v917
    %v938 = vpack.c.b16 %v920, %v918
    %v939 = vpack.c.b16 %v923, %v921
    %v940 = vpack.c.b16 %v924, %v922
    %957 = vmatprep.subr.bf16.mxu0 %v940
    %958 = vmatpush1.bf16.msra.mxu0 %v939
    %959 = vmatprep.subr.bf16.mxu0 %v938
    %960 = vmatpush1.bf16.msra.mxu0 %v937
    %961 = vmatprep.subr.bf16.mxu0 %v936
    %962 = vmatpush1.bf16.msra.mxu0 %v935
    %963 = vmatprep.subr.bf16.mxu0 %v934
    %964 = vmatpush1.bf16.msra.mxu0 %v933
    %965 = vmatprep.subr.bf16.mxu0 %v932
    %966 = vmatpush1.bf16.msra.mxu0 %v931
    %967 = vmatprep.subr.bf16.mxu0 %v930
    %968 = vmatpush1.bf16.msra.mxu0 %v929
    %969 = vmatprep.subr.bf16.mxu0 %v928
    %970 = vmatpush1.bf16.msra.mxu0 %v927
    %971 = vmatprep.subr.bf16.mxu0 %v926
    %972 = vmatpush1.bf16.msra.mxu0 %v925
    %973 = vmatprep.subr.bf16.mxu0 0
    %974 = vmatpush2.bf16.msra.mxu0 0
    %975 = vmatprep.subr.bf16.mxu0 0
    %976 = vmatpush2.bf16.msra.mxu0 0
    %977 = vmatprep.subr.bf16.mxu0 0
    %978 = vmatpush2.bf16.msra.mxu0 0
    %979 = vmatprep.subr.bf16.mxu0 0
    %980 = vmatpush2.bf16.msra.mxu0 0
    %981 = vmatprep.subr.bf16.mxu0 0
    %982 = vmatpush2.bf16.msra.mxu0 0
    %983 = vmatprep.subr.bf16.mxu0 0
    %984 = vmatpush2.bf16.msra.mxu0 0
    %985 = vmatprep.subr.bf16.mxu0 0
    %986 = vmatpush2.bf16.msra.mxu0 0
    %987 = vmatprep.subr.bf16.mxu0 0
    %988 = vmatpush2.bf16.msra.mxu0 0
    %989 = vmatprep.mubr.bf16.mxu0 0
    %990 = vmatmul.mubr.bf16.gmra.mxu0 %v865
    %v991 = vpop.f32.mrf.mxu0
    %v992 = vadd.f32 %v870, %v991
    %v993 = vpop.f32.mrf.mxu0
    %v994 = vadd.f32 %v874, %v993
    %v995 = vpop.f32.mrf.mxu0
    %v996 = vadd.f32 %v870, %v995
    %v997 = vpop.f32.mrf.mxu0
    %v998 = vadd.f32 %v874, %v997
    %999 = vdwg.mxu0
    %v1000 = vmax.f32 %v992, 0.0
    %v1001 = vmax.f32 %v994, 0.0
    %v1002 = vmax.f32 %v996, 0.0
    %v1003 = vmax.f32 %v998, 0.0
    %v1004 = vld [vmem:[%s2 + $0x300] sm:$0xff]
    %v1005 = vld [vmem:[%s2 + $0x308] sm:$0xff]
    %v1006 = vld [vmem:[%s2 + $0x310] sm:$0xff]
    %v1007 = vld [vmem:[%s2 + $0x318] sm:$0xff]
    %v1008 = vld [vmem:[%s2 + $0x320] sm:$0xff]
    %v1009 = vld [vmem:[%s2 + $0x328] sm:$0xff]
    %v1010 = vld [vmem:[%s2 + $0x330] sm:$0xff]
    %v1011 = vld [vmem:[%s2 + $0x338] sm:$0xff]
    %v1012 = vld [vmem:[%s2 + $0x340] sm:$0xff]
    %v1013 = vld [vmem:[%s2 + $0x348] sm:$0xff]
    %v1014 = vld [vmem:[%s2 + $0x350] sm:$0xff]
    %v1015 = vld [vmem:[%s2 + $0x358] sm:$0xff]
    %v1016 = vld [vmem:[%s2 + $0x360] sm:$0xff]
    %v1017 = vld [vmem:[%s2 + $0x368] sm:$0xff]
    %v1018 = vld [vmem:[%s2 + $0x370] sm:$0xff]
    %v1019 = vld [vmem:[%s2 + $0x378] sm:$0xff]
    %v1020 = vld [vmem:[%s2 + $0x380] sm:$0xff]
    %v1021 = vld [vmem:[%s2 + $0x388] sm:$0xff]
    %v1022 = vld [vmem:[%s2 + $0x390] sm:$0xff]
    %v1023 = vld [vmem:[%s2 + $0x398] sm:$0xff]
    %v1024 = vld [vmem:[%s2 + $0x3a0] sm:$0xff]
    %v1025 = vld [vmem:[%s2 + $0x3a8] sm:$0xff]
    %v1026 = vld [vmem:[%s2 + $0x3b0] sm:$0xff]
    %v1027 = vld [vmem:[%s2 + $0x3b8] sm:$0xff]
    %v1028 = vld [vmem:[%s2 + $0x3c0] sm:$0xff]
    %v1029 = vld [vmem:[%s2 + $0x3c8] sm:$0xff]
    %v1030 = vld [vmem:[%s2 + $0x3d0] sm:$0xff]
    %v1031 = vld [vmem:[%s2 + $0x3d8] sm:$0xff]
    %v1032 = vld [vmem:[%s2 + $0x3e0] sm:$0xff]
    %v1033 = vld [vmem:[%s2 + $0x3e8] sm:$0xff]
    %v1034 = vld [vmem:[%s2 + $0x3f0] sm:$0xff]
    %v1035 = vld [vmem:[%s2 + $0x3f8] sm:$0xff]
    %s1036 = scalar_lea.vmem %s3, 19
    %v1037 = vld [vmem:[%s1036] ss:$8 sm:$0x3]
    %v1038 = vpack.c.bf16 %v1002, %v1000
    %v1039 = vpack.c.bf16 %v1003, %v1001
    %v1041 = vlaneseq
    %v1042 = vshrl.u32 %v1041, 7
    %v1043 = vsub.s32 0, %v1042
    %v1044 = vrot.slane %v1037, %v1043
    %v1045 = vlaneseq
    %v1046 = vshrl.u32 %v1045, 7
    %v1047 = vsub.s32 1, %v1046
    %v1048 = vrot.slane %v1037, %v1047
    %v1083 = vunpack.c.l.b16 %v1004
    %v1084 = vunpack.c.h.b16 %v1004
    %v1085 = vunpack.c.l.b16 %v1005
    %v1086 = vunpack.c.h.b16 %v1005
    %v1087 = vunpack.c.l.b16 %v1006
    %v1088 = vunpack.c.h.b16 %v1006
    %v1089 = vunpack.c.l.b16 %v1007
    %v1090 = vunpack.c.h.b16 %v1007
    %v1091 = vunpack.c.l.b16 %v1008
    %v1092 = vunpack.c.h.b16 %v1008
    %v1093 = vunpack.c.l.b16 %v1009
    %v1094 = vunpack.c.h.b16 %v1009
    %v1095 = vunpack.c.l.b16 %v1010
    %v1096 = vunpack.c.h.b16 %v1010
    %v1097 = vunpack.c.l.b16 %v1011
    %v1098 = vunpack.c.h.b16 %v1011
    %v1099 = vunpack.c.l.b16 %v1012
    %v1100 = vunpack.c.h.b16 %v1012
    %v1101 = vunpack.c.l.b16 %v1013
    %v1102 = vunpack.c.h.b16 %v1013
    %v1103 = vunpack.c.l.b16 %v1014
    %v1104 = vunpack.c.h.b16 %v1014
    %v1105 = vunpack.c.l.b16 %v1015
    %v1106 = vunpack.c.h.b16 %v1015
    %v1107 = vunpack.c.l.b16 %v1016
    %v1108 = vunpack.c.h.b16 %v1016
    %v1109 = vunpack.c.l.b16 %v1017
    %v1110 = vunpack.c.h.b16 %v1017
    %v1111 = vunpack.c.l.b16 %v1018
    %v1112 = vunpack.c.h.b16 %v1018
    %v1113 = vunpack.c.l.b16 %v1019
    %v1114 = vunpack.c.h.b16 %v1019
    %v1115 = vunpack.c.l.b16 %v1020
    %v1116 = vunpack.c.h.b16 %v1020
    %v1117 = vunpack.c.l.b16 %v1021
    %v1118 = vunpack.c.h.b16 %v1021
    %v1119 = vunpack.c.l.b16 %v1022
    %v1120 = vunpack.c.h.b16 %v1022
    %v1121 = vunpack.c.l.b16 %v1023
    %v1122 = vunpack.c.h.b16 %v1023
    %v1123 = vunpack.c.l.b16 %v1024
    %v1124 = vunpack.c.h.b16 %v1024
    %v1125 = vunpack.c.l.b16 %v1025
    %v1126 = vunpack.c.h.b16 %v1025
    %v1127 = vunpack.c.l.b16 %v1026
    %v1128 = vunpack.c.h.b16 %v1026
    %v1129 = vunpack.c.l.b16 %v1027
    %v1130 = vunpack.c.h.b16 %v1027
    %v1131 = vunpack.c.l.b16 %v1028
    %v1132 = vunpack.c.h.b16 %v1028
    %v1133 = vunpack.c.l.b16 %v1029
    %v1134 = vunpack.c.h.b16 %v1029
    %v1135 = vunpack.c.l.b16 %v1030
    %v1136 = vunpack.c.h.b16 %v1030
    %v1137 = vunpack.c.l.b16 %v1031
    %v1138 = vunpack.c.h.b16 %v1031
    %v1139 = vunpack.c.l.b16 %v1032
    %v1140 = vunpack.c.h.b16 %v1032
    %v1141 = vunpack.c.l.b16 %v1033
    %v1142 = vunpack.c.h.b16 %v1033
    %v1143 = vunpack.c.l.b16 %v1034
    %v1144 = vunpack.c.h.b16 %v1034
    %v1145 = vunpack.c.l.b16 %v1035
    %v1146 = vunpack.c.h.b16 %v1035
    %v1147 = vpack.c.b16 %v1085, %v1083
    %v1148 = vpack.c.b16 %v1086, %v1084
    %v1149 = vpack.c.b16 %v1089, %v1087
    %v1150 = vpack.c.b16 %v1090, %v1088
    %v1151 = vpack.c.b16 %v1093, %v1091
    %v1152 = vpack.c.b16 %v1094, %v1092
    %v1153 = vpack.c.b16 %v1097, %v1095
    %v1154 = vpack.c.b16 %v1098, %v1096
    %v1155 = vpack.c.b16 %v1101, %v1099
    %v1156 = vpack.c.b16 %v1102, %v1100
    %v1157 = vpack.c.b16 %v1105, %v1103
    %v1158 = vpack.c.b16 %v1106, %v1104
    %v1159 = vpack.c.b16 %v1109, %v1107
    %v1160 = vpack.c.b16 %v1110, %v1108
    %v1161 = vpack.c.b16 %v1113, %v1111
    %v1162 = vpack.c.b16 %v1114, %v1112
    %v1163 = vpack.c.b16 %v1117, %v1115
    %v1164 = vpack.c.b16 %v1118, %v1116
    %v1165 = vpack.c.b16 %v1121, %v1119
    %v1166 = vpack.c.b16 %v1122, %v1120
    %v1167 = vpack.c.b16 %v1125, %v1123
    %v1168 = vpack.c.b16 %v1126, %v1124
    %v1169 = vpack.c.b16 %v1129, %v1127
    %v1170 = vpack.c.b16 %v1130, %v1128
    %v1171 = vpack.c.b16 %v1133, %v1131
    %v1172 = vpack.c.b16 %v1134, %v1132
    %v1173 = vpack.c.b16 %v1137, %v1135
    %v1174 = vpack.c.b16 %v1138, %v1136
    %v1175 = vpack.c.b16 %v1141, %v1139
    %v1176 = vpack.c.b16 %v1142, %v1140
    %v1177 = vpack.c.b16 %v1145, %v1143
    %v1178 = vpack.c.b16 %v1146, %v1144
    %1211 = vmatprep.subr.bf16.mxu0 %v1162
    %1212 = vmatpush1.bf16.msra.mxu0 %v1161
    %1213 = vmatprep.subr.bf16.mxu0 %v1160
    %1214 = vmatpush1.bf16.msra.mxu0 %v1159
    %1215 = vmatprep.subr.bf16.mxu0 %v1158
    %1216 = vmatpush1.bf16.msra.mxu0 %v1157
    %1217 = vmatprep.subr.bf16.mxu0 %v1156
    %1218 = vmatpush1.bf16.msra.mxu0 %v1155
    %1219 = vmatprep.subr.bf16.mxu0 %v1154
    %1220 = vmatpush1.bf16.msra.mxu0 %v1153
    %1221 = vmatprep.subr.bf16.mxu0 %v1152
    %1222 = vmatpush1.bf16.msra.mxu0 %v1151
    %1223 = vmatprep.subr.bf16.mxu0 %v1150
    %1224 = vmatpush1.bf16.msra.mxu0 %v1149
    %1225 = vmatprep.subr.bf16.mxu0 %v1148
    %1226 = vmatpush1.bf16.msra.mxu0 %v1147
    %1227 = vmatprep.subr.bf16.mxu0 %v1178
    %1228 = vmatpush2.bf16.msra.mxu0 %v1177
    %1229 = vmatprep.subr.bf16.mxu0 %v1176
    %1230 = vmatpush2.bf16.msra.mxu0 %v1175
    %1231 = vmatprep.subr.bf16.mxu0 %v1174
    %1232 = vmatpush2.bf16.msra.mxu0 %v1173
    %1233 = vmatprep.subr.bf16.mxu0 %v1172
    %1234 = vmatpush2.bf16.msra.mxu0 %v1171
    %1235 = vmatprep.subr.bf16.mxu0 %v1170
    %1236 = vmatpush2.bf16.msra.mxu0 %v1169
    %1237 = vmatprep.subr.bf16.mxu0 %v1168
    %1238 = vmatpush2.bf16.msra.mxu0 %v1167
    %1239 = vmatprep.subr.bf16.mxu0 %v1166
    %1240 = vmatpush2.bf16.msra.mxu0 %v1165
    %1241 = vmatprep.subr.bf16.mxu0 %v1164
    %1242 = vmatpush2.bf16.msra.mxu0 %v1163
    %1243 = vmatprep.mubr.bf16.mxu0 %v1039
    %1244 = vmatmul.mubr.bf16.gmra.mxu0 %v1038
    %v1245 = vpop.f32.mrf.mxu0
    %v1246 = vadd.f32 %v1044, %v1245
    %v1247 = vpop.f32.mrf.mxu0
    %v1248 = vadd.f32 %v1048, %v1247
    %v1249 = vpop.f32.mrf.mxu0
    %v1250 = vadd.f32 %v1044, %v1249
    %v1251 = vpop.f32.mrf.mxu0
    %v1252 = vadd.f32 %v1048, %v1251
    %1253 = vdwg.mxu0
    %1254 = vst [vmem:[#allocation2] sm:$0xff] %v1246
    %1255 = vst [vmem:[#allocation2 + $0x8] sm:$0xff] %v1248
    %1256 = vst [vmem:[#allocation2 + $0x10] sm:$0xff] %v1250
    %1257 = vst [vmem:[#allocation2 + $0x18] sm:$0xff] %v1252
    // Predicated region
    $region18: #{vae_forward.1} parent=1 // pred_check
      _
    $region19: #{vae_forward.1} parent=1 // pred_check_branch
      %1259 = sbr.rel (0) target = $region21
    $region20: #{vae_forward.1} parent=1 // pred_region
      %s1261 = ssub.s32 512, 512
      %1262 = vsyncadd [#allocation3], %s1261
      %s1263 = sshll.u32 [#allocation2], 4
      %s1264 = int_to_ptr.vmem [resolvable:$true] %s1263
      %1269 = dma.vmem_to_hbm [thread:$0]  %s1264, 512, %s4, [#allocation3], 256, 256, 16
    $region21: #{vae_forward.1} parent=1 // pred_fallthru
      _
    // Predicated region
    $region22: #{vae_forward.1} parent=1 // pred_check
      _
    $region23: #{vae_forward.1} parent=1 // pred_check_branch
      %1271 = sbr.rel (0) target = $region25
    $region24: #{vae_forward.1} parent=1 // pred_region
      _
    $region25: #{vae_forward.1} parent=1 // pred_fallthru
      _
    // Predicated region
    $region26: #{vae_forward.1} parent=1 // pred_check
      _
    $region27: #{vae_forward.1} parent=1 // pred_check_branch
      %1273 = sbr.rel (0) target = $region29
    $region28: #{vae_forward.1} parent=1 // pred_region
      %1274 = dma.done [#allocation3], 512
    $region29: #{vae_forward.1} parent=1 // pred_fallthru
      _
    // Predicated region
    $region30: #{vae_forward.1} parent=1 // pred_check
      _
    $region31: #{vae_forward.1} parent=1 // pred_check_branch
      %1276 = sbr.rel (0) target = $region33
    $region32: #{vae_forward.1} parent=1 // pred_region
      _
    $region33: #{vae_forward.1} parent=1 // pred_fallthru
      _
    %1277 = vsyncpa [#allocation3], 1

</llo_original>
